<compile_context>
chip_gen: v5e
topology: v5e:2x2
jax: 0.10.0
libtpu: 0.0.40
codegen_flags: <defaults>
</compile_context>

<pallas_src>
import math

import jax
import jax.numpy as jnp
from jax.experimental import pallas as pl
from jax.experimental.pallas import tpu as pltpu


def _round_up(x, m):
    return ((x + m - 1) // m) * m


def _cdiv(a, b):
    return -(-a // b)


def _vmem_sizes():
    """Generation-aware VMEM sizing (v5e/v6e: 128 MiB, v7x: 64 MiB physical)."""
    cap = 64 * 1024 * 1024  # conservative fallback = smallest generation (v7x)
    try:
        info = pltpu.get_tpu_info()
        cap = int(getattr(info, "vmem_capacity_bytes", cap)) or cap
    except Exception:
        pass
    cap = max(cap, 32 * 1024 * 1024)
    tile_budget = int(cap * 0.65)   # tiles + double buffers + f32 temporaries
    vmem_limit = int(cap * 0.80)    # headroom for compiler scratch / semaphores
    return tile_budget, vmem_limit


def _fusion_kernel(x1_ref, x2_ref, w1_ref, w2_ref, b_ref, o_ref):
    # relu(x1 @ W1 + x2 @ W2 + b), f32 accumulation on the MXU.
    acc = jnp.dot(x1_ref[...], w1_ref[...], preferred_element_type=jnp.float32)
    acc = acc + jnp.dot(x2_ref[...], w2_ref[...], preferred_element_type=jnp.float32)
    acc = acc + b_ref[...]                       # (1, tn) broadcasts over rows
    o_ref[...] = jnp.maximum(acc, 0.0).astype(o_ref.dtype)


def prepare_params(weight, bias, x_dtype=jnp.float32, use_bf16_weights=False):
    """Split/transpose the PyTorch Linear(2*dim, dim) weight ONCE, choose the output
    column tile tn, and zero-pad the output dim up to a multiple of tn (lane-dense
    stores, no per-call weight work).  weight: (dim, 2*dim), bias: (dim,)."""
    dim = weight.shape[0]
    assert weight.shape == (dim, 2 * dim) and bias.shape == (dim,)

    w1 = weight[:, :dim].T            # (dim, dim)
    w2 = weight[:, dim:].T            # (dim, dim)

    # Weight dtype: match bf16 activations; optional (accuracy-gated) bf16 weights for f32
    # activations.  Accumulation stays f32 either way.
    if jnp.dtype(x_dtype) == jnp.bfloat16 or use_bf16_weights:
        w_dtype = jnp.bfloat16
    else:
        w_dtype = w1.dtype
    wbytes = jnp.dtype(w_dtype).itemsize

    # tn: largest multiple of 128 whose double-buffered W1+W2 column blocks fit half the
    # VMEM tile budget; pad the output dim up to a multiple of tn instead of forcing tn
    # down to a divisor of dim (keeps stores lane-dense even for awkward dims).
    budget, _ = _vmem_sizes()
    w_budget = budget // 2
    dim128 = _round_up(dim, 128)
    tn_cap = max(128, (w_budget // max(1, 4 * dim * wbytes)) // 128 * 128)
    tn = min(dim128, tn_cap)
    dim_pp = _round_up(dim, tn)       # multiple of tn (and of 128)

    if dim_pp != dim:
        pad = dim_pp - dim
        w1 = jnp.pad(w1, ((0, 0), (0, pad)))
        w2 = jnp.pad(w2, ((0, 0), (0, pad)))
        b = jnp.pad(bias, (0, pad))
    else:
        b = bias

    w1 = w1.astype(w_dtype)
    w2 = w2.astype(w_dtype)
    b2d = b.reshape(1, dim_pp).astype(jnp.float32)   # bias added to f32 accumulator
    return dim, dim_pp, tn, w1, w2, b2d


def _select_tm(M, dim, dim_pp, tn, xb, wb, ob, budget):
    """Largest row tile that fits the VMEM budget with <=12.5% ragged-row waste."""
    mult = max(8, 32 // xb)           # sublane multiple: 8 f32, 16 bf16, 32 int8/fp8

    w_vmem = 2 * (2 * dim * tn * wb) + 2 * tn * 4      # 2 bufs x (W1 + W2) + bias
    act_budget = max(0, budget - w_vmem)

    cap = _round_up(max(M, 1), mult)  # never tile past the (rounded) row count
    cands = sorted({8192, 4096, 2048, 1024, 512, 256, 128, 64, 32, 16, 8, cap},
                   reverse=True)

    def act_vmem(t):
        # 2 bufs x (x1 + x2 + out tile) + f32 matmul temporaries / accumulator.
        return 2 * t * (2 * dim * xb + tn * ob) + 2 * t * tn * 4

    fits = [c for c in cands if c % mult == 0 and c <= cap and act_vmem(c) <= act_budget]
    tm = None
    for c in fits:                    # largest tile with acceptable ragged-row waste
        if (_round_up(M, c) - M) / max(M, 1) <= 0.125:
            tm = c
            break
    if tm is None:
        tm = fits[0] if fits else mult
    return tm, mult


def feature_fusion(x1, x2, params):
    """x1, x2: (..., dim); params from prepare_params()."""
    dim, dim_pp, tn, w1, w2, b2d = params
    assert x1.shape == x2.shape and x1.shape[-1] == dim

    lead = x1.shape[:-1]
    M = int(math.prod(lead)) if lead else 1
    x1f = x1.reshape(M, dim)
    x2f = x2.reshape(M, dim)

    xb = x1.dtype.itemsize
    wb = w1.dtype.itemsize
    ob = x1.dtype.itemsize
    budget, vmem_limit = _vmem_sizes()
    tm, mult = _select_tm(M, dim, dim_pp, tn, xb, wb, ob, budget)

    n_j = dim_pp // tn

    # Megacore guard: keep >= 2 grid steps whenever possible so a 2-TC chip (v7x)
    # never idles a core; negligible cost on 1-TC chips.
    if _cdiv(M, tm) * n_j < 2 and M > mult:
        tm = max(mult, _round_up(_cdiv(M, 2), mult))
    n_i = _cdiv(M, tm)   # ragged last row tile handled by Pallas; no jnp.pad of activations

    # Grid order by HBM re-stream cost.
    w_total = 2 * dim * dim_pp * wb          # W1 + W2 bytes
    a_total = 2 * M * dim * xb               # x1 + x2 bytes
    row_outer = (n_i * w_total) <= (n_j * a_total)

    if row_outer:                            # (i, j), j inner: weights re-streamed per row tile
        grid = (n_i, n_j)
        x_map = lambda i, j: (i, 0)
        w_map = lambda i, j: (0, j)
        o_map = lambda i, j: (i, j)
    else:                                    # (j, i), i inner: activations re-streamed per col tile
        grid = (n_j, n_i)
        x_map = lambda j, i: (i, 0)
        w_map = lambda j, i: (0, j)
        o_map = lambda j, i: (i, j)

    extra = {}
    if hasattr(pl, "CostEstimate"):
        extra["cost_estimate"] = pl.CostEstimate(
            flops=4 * M * dim * dim_pp,
            transcendentals=0,
            bytes_accessed=int(a_total + w_total + M * dim_pp * ob + dim_pp * 4),
        )

    out = pl.pallas_call(
        _fusion_kernel,
        out_shape=jax.ShapeDtypeStruct((M, dim_pp), x1.dtype),
        grid_spec=pltpu.PrefetchScalarGridSpec(
            num_scalar_prefetch=0,
            grid=grid,
            in_specs=[
                pl.BlockSpec((tm, dim), x_map),    # x1 row tile
                pl.BlockSpec((tm, dim), x_map),    # x2 row tile
                pl.BlockSpec((dim, tn), w_map),    # W1 column block
                pl.BlockSpec((dim, tn), w_map),    # W2 column block
                pl.BlockSpec((1, tn), w_map),      # bias column block
            ],
            out_specs=pl.BlockSpec((tm, tn), o_map),
        ),
        compiler_params=pltpu.CompilerParams(
            dimension_semantics=("parallel", "parallel"),
            vmem_limit_bytes=vmem_limit,
        ),
        **extra,
    )(x1f, x2f, w1, w2, b2d)

    if dim_pp != dim:
        out = out[:, :dim]
    return out.reshape(*lead, dim)


def init_params(key, dim, dtype=jnp.float32):
    # nn.Linear default init: U(-1/sqrt(fan_in), 1/sqrt(fan_in)), fan_in = 2*dim.
    kw, kb = jax.random.split(key)
    bound = 1.0 / math.sqrt(2 * dim)
    weight = jax.random.uniform(kw, (dim, 2 * dim), dtype, minval=-bound, maxval=bound)
    bias = jax.random.uniform(kb, (dim,), dtype, minval=-bound, maxval=bound)
    return weight, bias


if __name__ == "__main__":
    key = jax.random.PRNGKey(0)
    k1, k2, kp = jax.random.split(key, 3)

    B, S, dim = 2, 8, 32
    x1 = jax.random.normal(k1, (B, S, dim), jnp.float32)
    x2 = jax.random.normal(k2, (B, S, dim), jnp.float32)
    weight, bias = init_params(kp, dim)

    params = prepare_params(weight, bias, x_dtype=x1.dtype)   # split/transpose/pad ONCE
    out = feature_fusion(x1, x2, params)
    out = jax.block_until_ready(out)

    # Pure-JAX reference (concat -> linear -> relu), same as the PyTorch module.
    ref = jnp.maximum(jnp.concatenate([x1, x2], axis=-1) @ weight.T + bias, 0.0)
    assert out.shape == (B, S, dim)
    assert jnp.allclose(out, ref, atol=1e-5, rtol=1e-5)

    print("KERNEL_OK")
</pallas_src>

<mosaic_0001>
module attributes {stable_mosaic.version = 11 : i64} {
  func.func @_fusion_kernel(%arg0: i32, %arg1: i32, %arg2: memref<8x32xf32, #tpu.memory_space<vmem>>, %arg3: memref<8x32xf32, #tpu.memory_space<vmem>>, %arg4: memref<32x128xf32, #tpu.memory_space<vmem>>, %arg5: memref<32x128xf32, #tpu.memory_space<vmem>>, %arg6: memref<1x128xf32, #tpu.memory_space<vmem>>, %arg7: memref<8x128xf32, #tpu.memory_space<vmem>>) attributes {dimension_semantics = [#tpu.dimension_semantics<parallel>, #tpu.dimension_semantics<parallel>], iteration_bounds = array<i64: 1, 2>, scalar_prefetch = 0 : i64, scratch_operands = 0 : i64, tpu.core_type = #tpu.core_type<tc>, window_params = [{transform_indices = @transform_0, window_bounds = array<i64: 8, 32>}, {transform_indices = @transform_1, window_bounds = array<i64: 8, 32>}, {transform_indices = @transform_2, window_bounds = array<i64: 32, 128>}, {transform_indices = @transform_3, window_bounds = array<i64: 32, 128>}, {transform_indices = @transform_4, window_bounds = array<i64: 1, 128>}, {transform_indices = @transform_5, window_bounds = array<i64: 8, 128>}]} {
    %c0 = arith.constant 0 : index
    %c0_0 = arith.constant 0 : index
    %0 = vector.load %arg2[%c0, %c0_0] : memref<8x32xf32, #tpu.memory_space<vmem>>, vector<8x32xf32>
    %c0_1 = arith.constant 0 : index
    %c0_2 = arith.constant 0 : index
    %1 = vector.load %arg4[%c0_1, %c0_2] : memref<32x128xf32, #tpu.memory_space<vmem>>, vector<32x128xf32>
    %cst = arith.constant dense<0.000000e+00> : vector<8x128xf32>
    %2 = tpu.matmul %0, %1, %cst {dimension_numbers = #tpu.dot_dimension_numbers<[1], [0], [0], [1], [0, 0, 1, 1], [], []>} : vector<8x32xf32>, vector<32x128xf32>, vector<8x128xf32> -> vector<8x128xf32>
    %c0_3 = arith.constant 0 : index
    %c0_4 = arith.constant 0 : index
    %3 = vector.load %arg3[%c0_3, %c0_4] : memref<8x32xf32, #tpu.memory_space<vmem>>, vector<8x32xf32>
    %c0_5 = arith.constant 0 : index
    %c0_6 = arith.constant 0 : index
    %4 = vector.load %arg5[%c0_5, %c0_6] : memref<32x128xf32, #tpu.memory_space<vmem>>, vector<32x128xf32>
    %cst_7 = arith.constant dense<0.000000e+00> : vector<8x128xf32>
    %5 = tpu.matmul %3, %4, %cst_7 {dimension_numbers = #tpu.dot_dimension_numbers<[1], [0], [0], [1], [0, 0, 1, 1], [], []>} : vector<8x32xf32>, vector<32x128xf32>, vector<8x128xf32> -> vector<8x128xf32>
    %6 = arith.addf %2, %5 : vector<8x128xf32>
    %c0_8 = arith.constant 0 : index
    %c0_9 = arith.constant 0 : index
    %7 = vector.load %arg6[%c0_8, %c0_9] : memref<1x128xf32, #tpu.memory_space<vmem>>, vector<1x128xf32>
    %8 = vector.broadcast %7 : vector<1x128xf32> to vector<8x128xf32>
    %9 = arith.addf %6, %8 : vector<8x128xf32>
    %cst_10 = arith.constant 0.000000e+00 : f32
    %10 = vector.broadcast %cst_10 : f32 to vector<8x128xf32>
    %11 = arith.maximumf %9, %10 : vector<8x128xf32>
    %c0_11 = arith.constant 0 : index
    %c0_12 = arith.constant 0 : index
    %12 = vector.load %arg7[%c0_11, %c0_12] : memref<8x128xf32, #tpu.memory_space<vmem>>, vector<8x128xf32>
    tpu.vector_store %arg7[%c0_11, %c0_12], %11 {strides = array<i32>} : memref<8x128xf32, #tpu.memory_space<vmem>>, vector<8x128xf32>,
    return
  }
  func.func @transform_0(%arg0: i32, %arg1: i32) -> (i32, i32) {
    %c0_i32 = arith.constant 0 : i32
    %c0_i32_0 = arith.constant 0 : i32
    return %arg1, %c0_i32 : i32, i32
  }
  func.func @transform_1(%arg0: i32, %arg1: i32) -> (i32, i32) {
    %c0_i32 = arith.constant 0 : i32
    %c0_i32_0 = arith.constant 0 : i32
    return %arg1, %c0_i32 : i32, i32
  }
  func.func @transform_2(%arg0: i32, %arg1: i32) -> (i32, i32) {
    %c0_i32 = arith.constant 0 : i32
    %c0_i32_0 = arith.constant 0 : i32
    return %c0_i32, %arg0 : i32, i32
  }
  func.func @transform_3(%arg0: i32, %arg1: i32) -> (i32, i32) {
    %c0_i32 = arith.constant 0 : i32
    %c0_i32_0 = arith.constant 0 : i32
    return %c0_i32, %arg0 : i32, i32
  }
  func.func @transform_4(%arg0: i32, %arg1: i32) -> (i32, i32) {
    %c0_i32 = arith.constant 0 : i32
    %c0_i32_0 = arith.constant 0 : i32
    return %c0_i32, %arg0 : i32, i32
  }
  func.func @transform_5(%arg0: i32, %arg1: i32) -> (i32, i32) {
    %c0_i32 = arith.constant 0 : i32
    return %arg1, %arg0 : i32, i32
  }
}

</mosaic_0001>

<llo_original>
// kernel: tpu_custom_call.1
$region0: #{tpu_custom_call.1}
  #allocation0 [shape = 'u32[]', space=smem, size = 0x4, offset = 0x4, fixed_abs, tag = 'smem constant byte address 0x4 - core index']
  #allocation1 [shape = 'u32[72,128]{1,0:T(1,128)}', space=vmem, size = 0x9000, scoped, tag = 'internal scratch']
  %s0 = inlined_call_operand.hbm [shape: f32[16,32], index: 0, kind: input, shape index: {}]
  %s1 = inlined_call_operand.hbm [shape: f32[16,32], index: 1, kind: input, shape index: {}]
  %s2 = inlined_call_operand.hbm [shape: f32[32,128], index: 2, kind: input, shape index: {}]
  %s3 = inlined_call_operand.hbm [shape: f32[32,128], index: 3, kind: input, shape index: {}]
  %s4 = inlined_call_operand.vmem [shape: f32[1,128], index: 4, kind: input, shape index: {}]
  %s5 = inlined_call_operand.hbm [shape: f32[16,128], index: 5, kind: output, shape index: {}]
  %s6 = sld [smem:[#allocation0]]
  $region69: #{tpu_custom_call.1} parent=0
    _
  %s8 = ssub.s32 1, %s6
  %s9 = scalar_select 0, %s8, %s6
  $region1: #{tpu_custom_call.1} parent=0
    #allocation2 [shape = 'u8[8192]{0}', space=vmem, size = 0x2000, scoped, tag = 'input window, operand 0']
    #allocation3 [shape = 's32[2]{0}', space=sflag, size = 0x8, scoped, tag = 'scoped memory for tpu_custom_call.1']
    #allocation4 [shape = 's32[2]{0}', space=sflag, size = 0x8, scoped, tag = 'scoped memory for tpu_custom_call.1']
    #allocation5 [shape = 'u8[8192]{0}', space=vmem, size = 0x2000, scoped, tag = 'input window, operand 1']
    #allocation6 [shape = 's32[2]{0}', space=sflag, size = 0x8, scoped, tag = 'scoped memory for tpu_custom_call.1']
    #allocation7 [shape = 'u8[16384]{0}', space=vmem, size = 0x4000, scoped, tag = 'input window, operand 2, single buffered']
    #allocation8 [shape = 'u8[16384]{0}', space=vmem, size = 0x4000, scoped, tag = 'input window, operand 3, single buffered']
    #allocation9 [shape = 's32[1]{0}', space=sflag, size = 0x4, scoped, tag = 'scoped memory for tpu_custom_call.1']
    #allocation10 [shape = 'u8[8192]{0}', space=vmem, size = 0x2000, scoped, tag = 'output window, operand 0']
    %10 = vsyncpa [#allocation3], 0
    %s11 = scalar_lea.sflag [#allocation3], 1
    %12 = vsyncpa %s11, 0
    %13 = vsyncpa [#allocation6], 0
    %s14 = scalar_lea.sflag [#allocation6], 1
    %15 = vsyncpa %s14, 0
    %16 = vsyncpa [#allocation9], 0
    %17 = vsyncpa [#allocation4], 0
    %s18 = scalar_lea.sflag [#allocation4], 1
    %19 = vsyncpa %s18, 0
    loop: start=0, step=1, limit=4
    $region2: #{tpu_custom_call.1} parent=1 // loop_pre_header
      _
    $region3: #{tpu_custom_call.1} parent=1 // loop_header
      %s21 = sphi 0, %s25
      %p22 = scmp.ge.s32.totalorder %s21, 4
      %s28 = sphi 0, %s40
      %s29 = sphi 0, %s36
      %s30 = sphi 0, %s28
      %s31 = sphi 0, %s29
      %s32 = sphi 0, %s30
      %s33 = sphi 0, %s31
      %s43 = sphi 0, %s45
      %s46 = sphi 0, %s43
      %s47 = sphi 0, %s46
      %s63 = sphi 0, %s47
      %s69 = sphi 0, %s71
      %s72 = sphi 0, %s69
      %s73 = sphi 0, %s72
      %s89 = sphi 0, %s73
      %s95 = sphi 0, %s97
      %s98 = sphi 0, %s95
      %s99 = sphi 0, %s98
      %s115 = sphi 0, %s99
      %s121 = sphi 0, %s123
      %s124 = sphi 0, %s121
      %s125 = sphi 0, %s124
      %s141 = sphi 0, %s125
      %s147 = sphi 0, %s149
      %s150 = sphi 0, %s147
      %s151 = sphi 0, %s150
      %s167 = sphi 0, %s151
      %s175 = sphi 0, %s177
      %s178 = sphi 0, %s175
      %s179 = sphi 0, %s178
      %s195 = sphi 0, %s179
    $region4: #{tpu_custom_call.1} parent=1 // loop_header_branch
      %24 = sbr.rel (%p22) target = $region8
    $region5: #{tpu_custom_call.1} parent=1 // loop_body
      %s26 = ssub.s32 %s21, 1
      %s27 = ssub.s32 %s21, 2
      %s34 = sadd.s32 1, %s29
      %p35 = scmp.ge.s32.totalorder %s34, 2
      %s36 = scalar_select %p35, 0, %s34
      %s37 = sadd.s32 1, %s28
      %s38 = scalar_select %p35, %s37, %s28
      %p39 = scmp.ge.s32.totalorder %s38, 1
      %s40 = scalar_select %p39, 0, %s38
      %s41 = ssub.s32 %s29, %s36
      %p42 = scmp.eq.s32.totalorder %s41, 0
      %s44 = sadd.s32 %s43, 1
      %s45 = scalar_select %p42, %s43, %s44
      %p48 = pneg %p42
      %p49 = scmp.eq.s32.totalorder %s21, 1
      %p50 = por %p48, %p49
      %p51 = scmp.ne.s32.totalorder %s43, %s46
      %p52 = scmp.eq.s32.totalorder %s21, 0
      %p53 = por %p51, %p52
      %p54 = scmp.ne.s32.totalorder %s43, %s46
      %p55 = scmp.eq.s32.totalorder %s26, 1
      %p56 = por %p54, %p55
      %p57 = scmp.ne.s32.totalorder %s46, %s47
      %p58 = scmp.eq.s32.totalorder %s26, 0
      %p59 = por %p57, %p58
      %p60 = scmp.ne.s32.totalorder %s46, %s47
      %p61 = scmp.eq.s32.totalorder %s27, 1
      %p62 = por %p60, %p61
      %p64 = scmp.ne.s32.totalorder %s47, %s63
      %p65 = scmp.eq.s32.totalorder %s27, 0
      %p66 = por %p64, %p65
      %s67 = ssub.s32 %s29, %s36
      %p68 = scmp.eq.s32.totalorder %s67, 0
      %s70 = sadd.s32 %s69, 1
      %s71 = scalar_select %p68, %s69, %s70
      %p74 = pneg %p68
      %p75 = scmp.eq.s32.totalorder %s21, 1
      %p76 = por %p74, %p75
      %p77 = scmp.ne.s32.totalorder %s69, %s72
      %p78 = scmp.eq.s32.totalorder %s21, 0
      %p79 = por %p77, %p78
      %p80 = scmp.ne.s32.totalorder %s69, %s72
      %p81 = scmp.eq.s32.totalorder %s26, 1
      %p82 = por %p80, %p81
      %p83 = scmp.ne.s32.totalorder %s72, %s73
      %p84 = scmp.eq.s32.totalorder %s26, 0
      %p85 = por %p83, %p84
      %p86 = scmp.ne.s32.totalorder %s72, %s73
      %p87 = scmp.eq.s32.totalorder %s27, 1
      %p88 = por %p86, %p87
      %p90 = scmp.ne.s32.totalorder %s73, %s89
      %p91 = scmp.eq.s32.totalorder %s27, 0
      %p92 = por %p90, %p91
      %s93 = ssub.s32 %s28, %s40
      %p94 = scmp.eq.s32.totalorder %s93, 0
      %s96 = sadd.s32 %s95, 1
      %s97 = scalar_select %p94, %s95, %s96
      %p100 = pneg %p94
      %p101 = scmp.eq.s32.totalorder %s21, 1
      %p102 = por %p100, %p101
      %p103 = scmp.ne.s32.totalorder %s95, %s98
      %p104 = scmp.eq.s32.totalorder %s21, 0
      %p105 = por %p103, %p104
      %p106 = scmp.ne.s32.totalorder %s95, %s98
      %p107 = scmp.eq.s32.totalorder %s26, 1
      %p108 = por %p106, %p107
      %p109 = scmp.ne.s32.totalorder %s98, %s99
      %p110 = scmp.eq.s32.totalorder %s26, 0
      %p111 = por %p109, %p110
      %p112 = scmp.ne.s32.totalorder %s98, %s99
      %p113 = scmp.eq.s32.totalorder %s27, 1
      %p114 = por %p112, %p113
      %p116 = scmp.ne.s32.totalorder %s99, %s115
      %p117 = scmp.eq.s32.totalorder %s27, 0
      %p118 = por %p116, %p117
      %s119 = ssub.s32 %s28, %s40
      %p120 = scmp.eq.s32.totalorder %s119, 0
      %s122 = sadd.s32 %s121, 1
      %s123 = scalar_select %p120, %s121, %s122
      %p126 = pneg %p120
      %p127 = scmp.eq.s32.totalorder %s21, 1
      %p128 = por %p126, %p127
      %p129 = scmp.ne.s32.totalorder %s121, %s124
      %p130 = scmp.eq.s32.totalorder %s21, 0
      %p131 = por %p129, %p130
      %p132 = scmp.ne.s32.totalorder %s121, %s124
      %p133 = scmp.eq.s32.totalorder %s26, 1
      %p134 = por %p132, %p133
      %p135 = scmp.ne.s32.totalorder %s124, %s125
      %p136 = scmp.eq.s32.totalorder %s26, 0
      %p137 = por %p135, %p136
      %p138 = scmp.ne.s32.totalorder %s124, %s125
      %p139 = scmp.eq.s32.totalorder %s27, 1
      %p140 = por %p138, %p139
      %p142 = scmp.ne.s32.totalorder %s125, %s141
      %p143 = scmp.eq.s32.totalorder %s27, 0
      %p144 = por %p142, %p143
      %s145 = ssub.s32 %s28, %s40
      %p146 = scmp.eq.s32.totalorder %s145, 0
      %s148 = sadd.s32 %s147, 1
      %s149 = scalar_select %p146, %s147, %s148
      %p152 = pneg %p146
      %p153 = scmp.eq.s32.totalorder %s21, 1
      %p154 = por %p152, %p153
      %p155 = scmp.ne.s32.totalorder %s147, %s150
      %p156 = scmp.eq.s32.totalorder %s21, 0
      %p157 = por %p155, %p156
      %p158 = scmp.ne.s32.totalorder %s147, %s150
      %p159 = scmp.eq.s32.totalorder %s26, 1
      %p160 = por %p158, %p159
      %p161 = scmp.ne.s32.totalorder %s150, %s151
      %p162 = scmp.eq.s32.totalorder %s26, 0
      %p163 = por %p161, %p162
      %p164 = scmp.ne.s32.totalorder %s150, %s151
      %p165 = scmp.eq.s32.totalorder %s27, 1
      %p166 = por %p164, %p165
      %p168 = scmp.ne.s32.totalorder %s151, %s167
      %p169 = scmp.eq.s32.totalorder %s27, 0
      %p170 = por %p168, %p169
      %s171 = ssub.s32 %s29, %s36
      %s172 = ssub.s32 %s28, %s40
      %s173 = sor.u32 %s171, %s172
      %p174 = scmp.eq.s32.totalorder %s173, 0
      %s176 = sadd.s32 %s175, 1
      %s177 = scalar_select %p174, %s175, %s176
      %p180 = pneg %p174
      %p181 = scmp.eq.s32.totalorder %s21, 1
      %p182 = por %p180, %p181
      %p183 = scmp.ne.s32.totalorder %s175, %s178
      %p184 = scmp.eq.s32.totalorder %s21, 0
      %p185 = por %p183, %p184
      %p186 = scmp.ne.s32.totalorder %s175, %s178
      %p187 = scmp.eq.s32.totalorder %s26, 1
      %p188 = por %p186, %p187
      %p189 = scmp.ne.s32.totalorder %s178, %s179
      %p190 = scmp.eq.s32.totalorder %s26, 0
      %p191 = por %p189, %p190
      %p192 = scmp.ne.s32.totalorder %s178, %s179
      %p193 = scmp.eq.s32.totalorder %s27, 1
      %p194 = por %p192, %p193
      %p196 = scmp.ne.s32.totalorder %s179, %s195
      %p197 = scmp.eq.s32.totalorder %s27, 0
      %p198 = por %p196, %p197
      %p199 = scmp.le.s32.totalorder 1, %s21
      %p200 = scmp.lt.s32.totalorder %s21, 3
      %p201 = pnand %p199, %p200
      %p202 = pneg %p201
      // Predicated region
      $region9: #{tpu_custom_call.1} parent=5 // pred_check
        _
      $region10: #{tpu_custom_call.1} parent=5 // pred_check_branch
        %204 = sbr.rel (%p201) target = $region12
      $region11: #{tpu_custom_call.1} parent=5 // pred_region
        %s205 = ssub.s32 %s21, 1
        // Predicated region
        $region13: #{tpu_custom_call.1} parent=11 // pred_check
          %p206 = pneg %p111
        $region14: #{tpu_custom_call.1} parent=11 // pred_check_branch
          %208 = sbr.rel (%p206) target = $region16
        $region15: #{tpu_custom_call.1} parent=11 // pred_region
          %210 = vsyncadd [#allocation6], 0
          %s211 = smul.addr %s30, 8
          %s212 = scalar_lea.hbm %s2, %s211
          %s213 = sshll.u32 %s212, 4
          %s214 = int_to_ptr.hbm [resolvable:$true] %s213
          %s215 = sshll.u32 [#allocation7], 4
          %s216 = int_to_ptr.vmem [resolvable:$true] %s215
          %221 = dma.hbm_to_vmem [thread:$0]  %s214, 512, %s216, [#allocation6], 128, 128, 8
        $region16: #{tpu_custom_call.1} parent=11 // pred_fallthru
          _
        // Predicated region
        $region17: #{tpu_custom_call.1} parent=11 // pred_check
          %p222 = pneg %p137
        $region18: #{tpu_custom_call.1} parent=11 // pred_check_branch
          %224 = sbr.rel (%p222) target = $region20
        $region19: #{tpu_custom_call.1} parent=11 // pred_region
          %226 = vsyncadd [#allocation9], 0
          %s227 = smul.addr %s30, 8
          %s228 = scalar_lea.hbm %s3, %s227
          %s229 = sshll.u32 %s228, 4
          %s230 = int_to_ptr.hbm [resolvable:$true] %s229
          %s231 = sshll.u32 [#allocation8], 4
          %s232 = int_to_ptr.vmem [resolvable:$true] %s231
          %237 = dma.hbm_to_vmem [thread:$0]  %s230, 512, %s232, [#allocation9], 128, 128, 8
        $region20: #{tpu_custom_call.1} parent=11 // pred_fallthru
          _
        // Predicated region
        $region21: #{tpu_custom_call.1} parent=11 // pred_check
          %p238 = pneg %p163
        $region22: #{tpu_custom_call.1} parent=11 // pred_check_branch
          %240 = sbr.rel (%p238) target = $region24
        $region23: #{tpu_custom_call.1} parent=11 // pred_region
          %p241 = scmp.lt.s32.totalorder %s30, 0
          %s242 = scalar_select %p241, %s30, 0
          %s243 = scalar_lea.vmem %s4, %s242
        $region24: #{tpu_custom_call.1} parent=11 // pred_fallthru
          _
      $region12: #{tpu_custom_call.1} parent=5 // pred_fallthru
        _
      %p244 = scmp.lt.s32.totalorder %s21, 2
      // Predicated region
      $region25: #{tpu_custom_call.1} parent=5 // pred_check
        %p245 = pneg %p244
      $region26: #{tpu_custom_call.1} parent=5 // pred_check_branch
        %247 = sbr.rel (%p245) target = $region28
      $region27: #{tpu_custom_call.1} parent=5 // pred_region
        // Predicated region
        $region29: #{tpu_custom_call.1} parent=27 // pred_check
          %p248 = pneg %p53
        $region30: #{tpu_custom_call.1} parent=27 // pred_check_branch
          %250 = sbr.rel (%p248) target = $region32
        $region31: #{tpu_custom_call.1} parent=27 // pred_region
          %s251 = sand.u32 %s43, 1
          %s252 = scalar_lea.sflag [#allocation3], %s251
          %s253 = sand.u32 %s43, 1
          %s254 = smul.addr %s253, 8
          %s255 = scalar_lea.vmem [#allocation2], %s254
          %257 = vsyncadd %s252, 0
          %s258 = smul.addr %s29, 8
          %s259 = scalar_lea.hbm %s0, %s258
          %s261 = sshll.u32 %s259, 4
          %s262 = int_to_ptr.hbm [resolvable:$true] %s261
          %s263 = sshll.u32 %s255, 4
          %s264 = int_to_ptr.vmem [resolvable:$true] %s263
          %266 = dma.hbm_to_vmem [thread:$0]  %s262, 128, %s264, %s252
        $region32: #{tpu_custom_call.1} parent=27 // pred_fallthru
          _
        // Predicated region
        $region33: #{tpu_custom_call.1} parent=27 // pred_check
          %p267 = pneg %p79
        $region34: #{tpu_custom_call.1} parent=27 // pred_check_branch
          %269 = sbr.rel (%p267) target = $region36
        $region35: #{tpu_custom_call.1} parent=27 // pred_region
          %s270 = sand.u32 %s21, 1
          %s271 = scalar_lea.sflag [#allocation6], %s270
          %s272 = sand.u32 %s69, 1
          %s273 = smul.addr %s272, 8
          %s274 = scalar_lea.vmem [#allocation5], %s273
          %276 = vsyncadd %s271, 0
          %s277 = smul.addr %s29, 8
          %s278 = scalar_lea.hbm %s1, %s277
          %s280 = sshll.u32 %s278, 4
          %s281 = int_to_ptr.hbm [resolvable:$true] %s280
          %s282 = sshll.u32 %s274, 4
          %s283 = int_to_ptr.vmem [resolvable:$true] %s282
          %285 = dma.hbm_to_vmem [thread:$0]  %s281, 128, %s283, %s271
        $region36: #{tpu_custom_call.1} parent=27 // pred_fallthru
          _
      $region28: #{tpu_custom_call.1} parent=5 // pred_fallthru
        _
      %p286 = scmp.le.s32.totalorder 1, %s21
      %p287 = scmp.lt.s32.totalorder %s21, 3
      %p288 = pnand %p286, %p287
      %p289 = pneg %p288
      // Predicated region
      $region37: #{tpu_custom_call.1} parent=5 // pred_check
        _
      $region38: #{tpu_custom_call.1} parent=5 // pred_check_branch
        %291 = sbr.rel (%p288) target = $region40
      $region39: #{tpu_custom_call.1} parent=5 // pred_region
        %s292 = ssub.s32 %s21, 1
        %s293 = sand.u32 %s46, 1
        %s294 = scalar_lea.sflag [#allocation3], %s293
        %s295 = sand.u32 %s46, 1
        %s296 = smul.addr %s295, 8
        %s297 = scalar_lea.vmem [#allocation2], %s296
        // Predicated region
        $region41: #{tpu_custom_call.1} parent=39 // pred_check
          %p298 = pneg %p59
        $region42: #{tpu_custom_call.1} parent=39 // pred_check_branch
          %300 = sbr.rel (%p298) target = $region44
        $region43: #{tpu_custom_call.1} parent=39 // pred_region
          %302 = dma.done %s294, 128
        $region44: #{tpu_custom_call.1} parent=39 // pred_fallthru
          _
        %s303 = sand.u32 %s26, 1
        %s304 = scalar_lea.sflag [#allocation6], %s303
        %s305 = sand.u32 %s72, 1
        %s306 = smul.addr %s305, 8
        %s307 = scalar_lea.vmem [#allocation5], %s306
        // Predicated region
        $region45: #{tpu_custom_call.1} parent=39 // pred_check
          %p308 = pneg %p85
        $region46: #{tpu_custom_call.1} parent=39 // pred_check_branch
          %310 = sbr.rel (%p308) target = $region48
        $region47: #{tpu_custom_call.1} parent=39 // pred_region
          %312 = dma.done %s304, 128
        $region48: #{tpu_custom_call.1} parent=39 // pred_fallthru
          _
        // Predicated region
        $region49: #{tpu_custom_call.1} parent=39 // pred_check
          %p313 = pneg %p111
        $region50: #{tpu_custom_call.1} parent=39 // pred_check_branch
          %315 = sbr.rel (%p313) target = $region52
        $region51: #{tpu_custom_call.1} parent=39 // pred_region
          %317 = dma.done [#allocation6], 512
        $region52: #{tpu_custom_call.1} parent=39 // pred_fallthru
          _
        // Predicated region
        $region53: #{tpu_custom_call.1} parent=39 // pred_check
          %p318 = pneg %p137
        $region54: #{tpu_custom_call.1} parent=39 // pred_check_branch
          %320 = sbr.rel (%p318) target = $region56
        $region55: #{tpu_custom_call.1} parent=39 // pred_region
          %322 = dma.done [#allocation9], 512
        $region56: #{tpu_custom_call.1} parent=39 // pred_fallthru
          _
        %s323 = sand.u32 %s46, 1
        %s324 = scalar_lea.sflag [#allocation3], %s323
        %s325 = sand.u32 %s46, 1
        %s326 = smul.addr %s325, 8
        %s327 = scalar_lea.vmem [#allocation2], %s326
        %p328 = pneg %p59
        %p329 = pneg %p56
        %s330 = sand.u32 %s26, 1
        %s331 = scalar_lea.sflag [#allocation6], %s330
        %s332 = sand.u32 %s72, 1
        %s333 = smul.addr %s332, 8
        %s334 = scalar_lea.vmem [#allocation5], %s333
        %p335 = pneg %p85
        %p336 = pneg %p82
        %p337 = pneg %p111
        %p338 = pneg %p108
        %p339 = pneg %p137
        %p340 = pneg %p134
        %p341 = scmp.lt.s32.totalorder %s30, 0
        %s342 = scalar_select %p341, %s30, 0
        %s343 = scalar_lea.vmem %s4, %s342
        %p344 = pneg %p163
        %p345 = pneg %p160
        %p346 = pneg %p191
        %p347 = pneg %p188
        %s348 = sand.u32 %s178, 1
        %s349 = scalar_lea.sflag [#allocation4], %s348
        %s350 = sand.u32 %s178, 1
        %s351 = smul.addr %s350, 8
        %s352 = scalar_lea.vmem [#allocation10], %s351
        %p353 = scmp.lt.s32.totalorder %s30, 0
        %s354 = scalar_select %p353, %s30, 0
        %s355 = scalar_lea.vmem %s4, %s354
        %v356 = vld [vmem:[%s297] sm:$0xff]
        %v357 = vld [vmem:[#allocation7] sm:$0xff]
        %v358 = vld [vmem:[#allocation7 + $0x8] sm:$0xff]
        %v359 = vld [vmem:[#allocation7 + $0x10] sm:$0xff]
        %v360 = vld [vmem:[#allocation7 + $0x18] sm:$0xff]
        %v361 = vld [vmem:[%s307] sm:$0xff]
        %v362 = vld [vmem:[#allocation8] sm:$0xff]
        %v363 = vld [vmem:[#allocation8 + $0x8] sm:$0xff]
        %v364 = vld [vmem:[#allocation8 + $0x10] sm:$0xff]
        %v365 = vld [vmem:[#allocation8 + $0x18] sm:$0xff]
        %vm366 = vcmask 261120
        %v368 = vsel %vm366, %v361, 0
        %370 = vmatpush.msra.mxu0 0.0
        %371 = vmatpush.msra.mxu0 0.0
        %372 = vmatpush.msra.mxu0 0.0
        %373 = vmatpush.msra.mxu0 0.0
        %374 = vmatpush.msra.mxu0 0.0
        %375 = vmatpush.msra.mxu0 0.0
        %376 = vmatpush.msra.mxu0 0.0
        %377 = vmatpush.msra.mxu0 0.0
        %378 = vmatpush.msra.mxu0 0.0
        %379 = vmatpush.msra.mxu0 0.0
        %380 = vmatpush.msra.mxu0 0.0
        %381 = vmatpush.msra.mxu0 0.0
        %382 = vmatpush.msra.mxu0 %v365
        %383 = vmatpush.msra.mxu0 %v364
        %384 = vmatpush.msra.mxu0 %v363
        %385 = vmatpush.msra.mxu0 %v362
        %386 = vmatmul.f32.gmra.mxu0 %v368
        %v387 = vpop.f32.mrf.mxu0
        %v388 = vadd.f32 0.0, %v387
        %389 = vdwg.mxu0
        %v391 = vsel %vm366, %v356, 0
        %393 = vmatpush.msra.mxu0 0.0
        %394 = vmatpush.msra.mxu0 0.0
        %395 = vmatpush.msra.mxu0 0.0
        %396 = vmatpush.msra.mxu0 0.0
        %397 = vmatpush.msra.mxu0 0.0
        %398 = vmatpush.msra.mxu0 0.0
        %399 = vmatpush.msra.mxu0 0.0
        %400 = vmatpush.msra.mxu0 0.0
        %401 = vmatpush.msra.mxu0 0.0
        %402 = vmatpush.msra.mxu0 0.0
        %403 = vmatpush.msra.mxu0 0.0
        %404 = vmatpush.msra.mxu0 0.0
        %405 = vmatpush.msra.mxu0 %v360
        %406 = vmatpush.msra.mxu0 %v359
        %407 = vmatpush.msra.mxu0 %v358
        %408 = vmatpush.msra.mxu0 %v357
        %409 = vmatmul.f32.gmra.mxu0 %v391
        %v410 = vpop.f32.mrf.mxu0
        %v411 = vadd.f32 %v388, %v410
        %412 = vdwg.mxu0
        %v413 = vld [vmem:[%s355] sm:$0x1]
        %v415 = vperm.slane %v413, 0
        %v417 = vadd.f32 %v411, %v415
        %v418 = vmax.f32 %v417, 0.0
        %419 = vst [vmem:[%s352] sm:$0xff] %v418
        %s420 = sand.u32 %s178, 1
        %s421 = scalar_lea.sflag [#allocation4], %s420
        %s422 = sand.u32 %s178, 1
        %s423 = smul.addr %s422, 8
        %s424 = scalar_lea.vmem [#allocation10], %s423
        // Predicated region
        $region57: #{tpu_custom_call.1} parent=39 // pred_check
          %p425 = pneg %p188
        $region58: #{tpu_custom_call.1} parent=39 // pred_check_branch
          %427 = sbr.rel (%p425) target = $region60
        $region59: #{tpu_custom_call.1} parent=39 // pred_region
          %429 = vsyncadd %s421, 0
          %s430 = sadd.s32 %s30, %s31
          %s431 = smul.addr %s430, 8
          %s432 = scalar_lea.hbm %s5, %s431
          %s434 = sshll.u32 %s424, 4
          %s435 = int_to_ptr.vmem [resolvable:$true] %s434
          %s436 = sshll.u32 %s432, 4
          %s437 = int_to_ptr.hbm [resolvable:$true] %s436
          %439 = dma.vmem_to_hbm [thread:$0]  %s435, 128, %s437, %s421
        $region60: #{tpu_custom_call.1} parent=39 // pred_fallthru
          _
      $region40: #{tpu_custom_call.1} parent=5 // pred_fallthru
        _
      %p440 = scmp.le.s32.totalorder 2, %s21
      // Predicated region
      $region61: #{tpu_custom_call.1} parent=5 // pred_check
        %p441 = pneg %p440
      $region62: #{tpu_custom_call.1} parent=5 // pred_check_branch
        %443 = sbr.rel (%p441) target = $region64
      $region63: #{tpu_custom_call.1} parent=5 // pred_region
        %s444 = ssub.s32 %s21, 2
        // Predicated region
        $region65: #{tpu_custom_call.1} parent=63 // pred_check
          %p445 = pneg %p194
        $region66: #{tpu_custom_call.1} parent=63 // pred_check_branch
          %447 = sbr.rel (%p445) target = $region68
        $region67: #{tpu_custom_call.1} parent=63 // pred_region
          %s448 = sand.u32 %s179, 1
          %s449 = scalar_lea.sflag [#allocation4], %s448
          %s450 = sand.u32 %s179, 1
          %s451 = smul.addr %s450, 8
          %s452 = scalar_lea.vmem [#allocation10], %s451
          %454 = dma.done %s449, 128
        $region68: #{tpu_custom_call.1} parent=63 // pred_fallthru
          _
      $region64: #{tpu_custom_call.1} parent=5 // pred_fallthru
        _
    $region6: #{tpu_custom_call.1} parent=1 // loop_footer
      %s25 = sadd.s32 1, %s21
    $region7: #{tpu_custom_call.1} parent=1 // loop_footer_branch
      %20 = sbr.rel target = $region3
    $region8: #{tpu_custom_call.1} parent=1 // loop_exit
      _
    %455 = vsyncpa [#allocation3], 1
    %s456 = scalar_lea.sflag [#allocation3], 1
    %457 = vsyncpa %s456, 1
    %458 = vsyncpa [#allocation6], 1
    %s459 = scalar_lea.sflag [#allocation6], 1
    %460 = vsyncpa %s459, 1
    %461 = vsyncpa [#allocation9], 1
    %462 = vsyncpa [#allocation4], 1
    %s463 = scalar_lea.sflag [#allocation4], 1
    %464 = vsyncpa %s463, 1

</llo_original>
